<compile_context>
chip_gen: v6e
topology: v6e:2x2x1
jax: 0.10.0
libtpu: 0.0.40
codegen_flags: <defaults>
</compile_context>

<pallas_src>
import jax
import jax.numpy as jnp
from jax import lax
from jax.experimental import pallas as pl
from jax.experimental.pallas import tpu as pltpu

N_STATES = 3      # Pendulum-v1 observation dim
N_ACTIONS = 3
HIDDEN = 50


def _round_up(n, m):
    return (n + m - 1) // m * m


def _pick_block_b(batch):
    """Batch tile width (lane dim of the output).

    Small batches: one full-extent block (any size is legal when the block dim
    equals the full array dim).  Large batches: multiple-of-128 tiles, split
    into >=2 grid steps so both v7x TensorCores get work, capped at 8192 so
    the per-step VMEM footprint stays small on v5e/v6e/v7x.
    """
    if batch <= 1024:
        return batch
    b = _round_up(batch, 128)
    half = _round_up((b + 1) // 2, 128)
    return min(8192, half)


def _net_kernel(x_ref, w1_ref, b1_ref, w2_ref, b2_ref, o_ref):
    # x_ref : (block_b, N_STATES)   -- batch-major, straight from HBM
    # w1_ref: (HIDDEN, N_STATES)    b1_ref: (HIDDEN, 1)
    # w2_ref: (N_ACTIONS, HIDDEN)   b2_ref: (N_ACTIONS, 1)
    # o_ref : (N_ACTIONS, block_b)  -- feature-major => lane-dense stores
    x = x_ref[...]

    # fc1 on the MXU: (H, S) x (B, S) contracted over S (minor dim of both
    # operands -- the Q @ K^T pattern) -> (H, B) with f32 accumulation.
    h = lax.dot_general(
        w1_ref[...], x,
        dimension_numbers=(((1,), (1,)), ((), ())),
        preferred_element_type=jnp.float32,
    )
    h = jnp.maximum(h + b1_ref[...], 0.0)          # bias + ReLU on the VPU

    # out layer on the MXU: (A, H) x (H, B) -> (A, B).
    y = jnp.dot(w2_ref[...], h, preferred_element_type=jnp.float32)
    o_ref[...] = y + b2_ref[...]


def net_forward_feature_major(x, w1, b1, w2, b2, *, block_b=None):
    """Q-values in feature-major layout: (N_ACTIONS, B)."""
    B = x.shape[0]
    if block_b is None:
        block_b = _pick_block_b(B)
    f32 = jnp.float32

    return pl.pallas_call(
        _net_kernel,
        out_shape=jax.ShapeDtypeStruct((N_ACTIONS, B), f32),
        grid=(pl.cdiv(B, block_b),),
        in_specs=[
            pl.BlockSpec((block_b, N_STATES), lambda i: (i, 0)),   # batch-blocked x
            pl.BlockSpec((HIDDEN, N_STATES), lambda i: (0, 0)),    # weights resident
            pl.BlockSpec((HIDDEN, 1), lambda i: (0, 0)),
            pl.BlockSpec((N_ACTIONS, HIDDEN), lambda i: (0, 0)),
            pl.BlockSpec((N_ACTIONS, 1), lambda i: (0, 0)),
        ],
        out_specs=pl.BlockSpec((N_ACTIONS, block_b), lambda i: (0, i)),
        compiler_params=pltpu.CompilerParams(
            # Batch axis is embarrassingly parallel: shards grid steps across
            # the two TensorCores on v7x; harmless on v5e/v6e.
            dimension_semantics=("parallel",),
            vmem_limit_bytes=32 * 1024 * 1024,
        ),
    )(
        x.astype(f32),
        w1.astype(f32),
        b1.astype(f32).reshape(HIDDEN, 1),
        w2.astype(f32),
        b2.astype(f32).reshape(N_ACTIONS, 1),
    )


def net_forward(x, w1, b1, w2, b2, *, block_b=None):
    """Module-compatible forward.

    x:  (B, N_STATES) float32
    w1: (HIDDEN, N_STATES), b1: (HIDDEN,)          -- PyTorch nn.Linear layout
    w2: (N_ACTIONS, HIDDEN), b2: (N_ACTIONS,)
    returns (B, N_ACTIONS) float32
    """
    # Tiny (3 x B) transpose to match nn.Module output layout; consumers that
    # can take feature-major output should use net_forward_feature_major.
    return net_forward_feature_major(x, w1, b1, w2, b2, block_b=block_b).T


def init_params(key):
    """PyTorch nn.Linear default init (U(-1/sqrt(fan_in), 1/sqrt(fan_in))), (out, in) layout."""
    k1, k2, k3, k4 = jax.random.split(key, 4)
    bound1 = 1.0 / jnp.sqrt(jnp.float32(N_STATES))
    bound2 = 1.0 / jnp.sqrt(jnp.float32(HIDDEN))
    w1 = jax.random.uniform(k1, (HIDDEN, N_STATES), jnp.float32, -bound1, bound1)
    b1 = jax.random.uniform(k2, (HIDDEN,), jnp.float32, -bound1, bound1)
    w2 = jax.random.uniform(k3, (N_ACTIONS, HIDDEN), jnp.float32, -bound2, bound2)
    b2 = jax.random.uniform(k4, (N_ACTIONS,), jnp.float32, -bound2, bound2)
    return w1, b1, w2, b2


def reference_forward(x, w1, b1, w2, b2):
    h = jnp.maximum(x @ w1.T + b1, 0.0)
    return h @ w2.T + b2


if __name__ == "__main__":
    key = jax.random.PRNGKey(0)
    kx, kp = jax.random.split(key)

    batch = 8
    x = jax.random.normal(kx, (batch, N_STATES), jnp.float32)
    w1, b1, w2, b2 = init_params(kp)

    fwd = jax.jit(net_forward)
    out = fwd(x, w1, b1, w2, b2)
    out = jax.block_until_ready(out)

    ref = reference_forward(x, w1, b1, w2, b2)
    assert out.shape == (batch, N_ACTIONS)
    assert jnp.allclose(out, ref, atol=1e-4, rtol=1e-4), float(jnp.max(jnp.abs(out - ref)))

    print("KERNEL_OK")
</pallas_src>

<mosaic_0001>
module attributes {stable_mosaic.version = 11 : i64} {
  func.func @_net_kernel(%arg0: i32, %arg1: memref<8x3xf32, #tpu.memory_space<vmem>>, %arg2: memref<50x3xf32, #tpu.memory_space<vmem>>, %arg3: memref<50x1xf32, #tpu.memory_space<vmem>>, %arg4: memref<3x50xf32, #tpu.memory_space<vmem>>, %arg5: memref<3x1xf32, #tpu.memory_space<vmem>>, %arg6: memref<3x8xf32, #tpu.memory_space<vmem>>) attributes {dimension_semantics = [#tpu.dimension_semantics<parallel>], iteration_bounds = array<i64: 1>, scalar_prefetch = 0 : i64, scratch_operands = 0 : i64, tpu.core_type = #tpu.core_type<tc>, window_params = [{transform_indices = @transform_0, window_bounds = array<i64: 8, 3>}, {pipeline_mode = #tpu.pipeline_mode<synchronous>, transform_indices = @transform_1, window_bounds = array<i64: 50, 3>}, {pipeline_mode = #tpu.pipeline_mode<synchronous>, transform_indices = @transform_2, window_bounds = array<i64: 50, 1>}, {pipeline_mode = #tpu.pipeline_mode<synchronous>, transform_indices = @transform_3, window_bounds = array<i64: 3, 50>}, {pipeline_mode = #tpu.pipeline_mode<synchronous>, transform_indices = @transform_4, window_bounds = array<i64: 3, 1>}, {transform_indices = @transform_5, window_bounds = array<i64: 3, 8>}]} {
    %c0 = arith.constant 0 : index
    %c0_0 = arith.constant 0 : index
    %0 = vector.load %arg1[%c0, %c0_0] : memref<8x3xf32, #tpu.memory_space<vmem>>, vector<8x3xf32>
    %c0_1 = arith.constant 0 : index
    %c0_2 = arith.constant 0 : index
    %1 = vector.load %arg2[%c0_1, %c0_2] : memref<50x3xf32, #tpu.memory_space<vmem>>, vector<50x3xf32>
    %cst = arith.constant dense<0.000000e+00> : vector<50x8xf32>
    %2 = tpu.matmul %1, %0, %cst {dimension_numbers = #tpu.dot_dimension_numbers<[1], [1], [0], [0], [0, 0, 1, 0], [], []>} : vector<50x3xf32>, vector<8x3xf32>, vector<50x8xf32> -> vector<50x8xf32>
    %c0_3 = arith.constant 0 : index
    %c0_4 = arith.constant 0 : index
    %3 = vector.load %arg3[%c0_3, %c0_4] : memref<50x1xf32, #tpu.memory_space<vmem>>, vector<50x1xf32>
    %4 = vector.broadcast %3 : vector<50x1xf32> to vector<50x8xf32>
    %5 = arith.addf %2, %4 : vector<50x8xf32>
    %cst_5 = arith.constant 0.000000e+00 : f32
    %6 = vector.broadcast %cst_5 : f32 to vector<50x8xf32>
    %7 = arith.maximumf %5, %6 : vector<50x8xf32>
    %c0_6 = arith.constant 0 : index
    %c0_7 = arith.constant 0 : index
    %8 = vector.load %arg4[%c0_6, %c0_7] : memref<3x50xf32, #tpu.memory_space<vmem>>, vector<3x50xf32>
    %cst_8 = arith.constant dense<0.000000e+00> : vector<3x8xf32>
    %9 = tpu.matmul %8, %7, %cst_8 {dimension_numbers = #tpu.dot_dimension_numbers<[1], [0], [0], [1], [0, 0, 1, 1], [], []>} : vector<3x50xf32>, vector<50x8xf32>, vector<3x8xf32> -> vector<3x8xf32>
    %c0_9 = arith.constant 0 : index
    %c0_10 = arith.constant 0 : index
    %10 = vector.load %arg5[%c0_9, %c0_10] : memref<3x1xf32, #tpu.memory_space<vmem>>, vector<3x1xf32>
    %11 = vector.broadcast %10 : vector<3x1xf32> to vector<3x8xf32>
    %12 = arith.addf %9, %11 : vector<3x8xf32>
    %c0_11 = arith.constant 0 : index
    %c0_12 = arith.constant 0 : index
    %13 = vector.load %arg6[%c0_11, %c0_12] : memref<3x8xf32, #tpu.memory_space<vmem>>, vector<3x8xf32>
    tpu.vector_store %arg6[%c0_11, %c0_12], %12 {strides = array<i32>} : memref<3x8xf32, #tpu.memory_space<vmem>>, vector<3x8xf32>,
    return
  }
  func.func @transform_0(%arg0: i32) -> (i32, i32) {
    %c0_i32 = arith.constant 0 : i32
    %c0_i32_0 = arith.constant 0 : i32
    return %arg0, %c0_i32 : i32, i32
  }
  func.func @transform_1(%arg0: i32) -> (i32, i32) {
    %c0_i32 = arith.constant 0 : i32
    %c0_i32_0 = arith.constant 0 : i32
    %c0_i32_1 = arith.constant 0 : i32
    return %c0_i32, %c0_i32_0 : i32, i32
  }
  func.func @transform_2(%arg0: i32) -> (i32, i32) {
    %c0_i32 = arith.constant 0 : i32
    %c0_i32_0 = arith.constant 0 : i32
    %c0_i32_1 = arith.constant 0 : i32
    return %c0_i32, %c0_i32_0 : i32, i32
  }
  func.func @transform_3(%arg0: i32) -> (i32, i32) {
    %c0_i32 = arith.constant 0 : i32
    %c0_i32_0 = arith.constant 0 : i32
    %c0_i32_1 = arith.constant 0 : i32
    return %c0_i32, %c0_i32_0 : i32, i32
  }
  func.func @transform_4(%arg0: i32) -> (i32, i32) {
    %c0_i32 = arith.constant 0 : i32
    %c0_i32_0 = arith.constant 0 : i32
    %c0_i32_1 = arith.constant 0 : i32
    return %c0_i32, %c0_i32_0 : i32, i32
  }
  func.func @transform_5(%arg0: i32) -> (i32, i32) {
    %c0_i32 = arith.constant 0 : i32
    %c0_i32_0 = arith.constant 0 : i32
    return %c0_i32, %arg0 : i32, i32
  }
}

</mosaic_0001>

<llo_original>
// kernel: net_forward.1
$region0: #{net_forward.1}
  #allocation0 [shape = 'u32[]', space=smem, size = 0x4, offset = 0x4, fixed_abs, tag = 'smem constant byte address 0x4 - core index']
  #allocation1 [shape = 'u32[144,128]{1,0:T(1,128)}', space=vmem, size = 0x12000, scoped, tag = 'internal scratch']
  %s0 = inlined_call_operand.vmem [shape: f32[8,3], index: 0, kind: input, shape index: {}]
  %s1 = inlined_call_operand.vmem [shape: f32[50,3], index: 1, kind: input, shape index: {}]
  %s2 = inlined_call_operand.vmem [shape: f32[50,1], index: 2, kind: input, shape index: {}]
  %s3 = inlined_call_operand.vmem [shape: f32[3,50], index: 3, kind: input, shape index: {}]
  %s4 = inlined_call_operand.vmem [shape: f32[3,1], index: 4, kind: input, shape index: {}]
  %s5 = inlined_call_operand.hbm [shape: f32[3,8], index: 5, kind: output, shape index: {}]
  %s6 = sld [smem:[#allocation0]]
  $region30: #{net_forward.1} parent=0
    _
  %s8 = ssub.s32 1, %s6
  %s9 = scalar_select 0, %s8, %s6
  $region1: #{net_forward.1} parent=0
    #allocation2 [shape = 'u8[2048]{0}', space=vmem, size = 0x800, scoped, tag = 'output window, operand 0, single buffered']
    #allocation3 [shape = 's32[1]{0}', space=sflag, size = 0x4, scoped, tag = 'scoped memory for net_forward.1']
    %10 = vsyncpa [#allocation3], 0
    // Predicated region
    $region2: #{net_forward.1} parent=1 // pred_check
      _
    $region3: #{net_forward.1} parent=1 // pred_check_branch
      %12 = sbr.rel (0) target = $region5
    $region4: #{net_forward.1} parent=1 // pred_region
      _
    $region5: #{net_forward.1} parent=1 // pred_fallthru
      _
    // Predicated region
    $region6: #{net_forward.1} parent=1 // pred_check
      _
    $region7: #{net_forward.1} parent=1 // pred_check_branch
      %14 = sbr.rel (0) target = $region9
    $region8: #{net_forward.1} parent=1 // pred_region
      _
    $region9: #{net_forward.1} parent=1 // pred_fallthru
      _
    // Predicated region
    $region10: #{net_forward.1} parent=1 // pred_check
      _
    $region11: #{net_forward.1} parent=1 // pred_check_branch
      %16 = sbr.rel (0) target = $region13
    $region12: #{net_forward.1} parent=1 // pred_region
      _
    $region13: #{net_forward.1} parent=1 // pred_fallthru
      _
    // Predicated region
    $region14: #{net_forward.1} parent=1 // pred_check
      _
    $region15: #{net_forward.1} parent=1 // pred_check_branch
      %18 = sbr.rel (0) target = $region17
    $region16: #{net_forward.1} parent=1 // pred_region
      _
    $region17: #{net_forward.1} parent=1 // pred_fallthru
      _
    // Predicated region
    $region18: #{net_forward.1} parent=1 // pred_check
      _
    $region19: #{net_forward.1} parent=1 // pred_check_branch
      %20 = sbr.rel (0) target = $region21
    $region20: #{net_forward.1} parent=1 // pred_region
      _
    $region21: #{net_forward.1} parent=1 // pred_fallthru
      _
    %v21 = vld [vmem:[%s0] sm:$0xff]
    %v22 = vld [vmem:[%s1] sm:$0xff]
    %v23 = vld [vmem:[%s1 + $0x8] sm:$0xff]
    %v24 = vld [vmem:[%s1 + $0x10] sm:$0xff]
    %v25 = vld [vmem:[%s1 + $0x18] sm:$0xff]
    %v26 = vld [vmem:[%s1 + $0x20] sm:$0xff]
    %v27 = vld [vmem:[%s1 + $0x28] sm:$0xff]
    %v28 = vld [vmem:[%s1 + $0x30] sm:$0x3]
    %v29 = vld [vmem:[%s2] sm:$0xff]
    %v30 = vld [vmem:[%s2 + $0x8] sm:$0xff]
    %v31 = vld [vmem:[%s2 + $0x10] sm:$0xff]
    %v32 = vld [vmem:[%s2 + $0x18] sm:$0xff]
    %v33 = vld [vmem:[%s2 + $0x20] sm:$0xff]
    %v34 = vld [vmem:[%s2 + $0x28] sm:$0xff]
    %v35 = vld [vmem:[%s2 + $0x30] sm:$0x3]
    %37 = vset.pattern.permute.xlu0 0
    %38 = vperm.xlu0 %37, %v29
    %v39 = vpop.permute.xlu0 %38
    %42 = vset.pattern.permute.xlu0 0
    %43 = vperm.xlu0 %42, %v30
    %v44 = vpop.permute.xlu0 %43
    %47 = vset.pattern.permute.xlu0 0
    %48 = vperm.xlu0 %47, %v31
    %v49 = vpop.permute.xlu0 %48
    %52 = vset.pattern.permute.xlu0 0
    %53 = vperm.xlu0 %52, %v32
    %v54 = vpop.permute.xlu0 %53
    %57 = vset.pattern.permute.xlu0 0
    %58 = vperm.xlu0 %57, %v33
    %v59 = vpop.permute.xlu0 %58
    %62 = vset.pattern.permute.xlu0 0
    %63 = vperm.xlu0 %62, %v34
    %v64 = vpop.permute.xlu0 %63
    %67 = vset.pattern.permute.xlu0 0
    %68 = vperm.xlu0 %67, %v35
    %v69 = vpop.permute.xlu0 %68
    %vm71 = vcmask 23552
    %v73 = vsel %vm71, %v22, 0
    %v76 = vsel %vm71, %v23, 0
    %v79 = vsel %vm71, %v24, 0
    %v82 = vsel %vm71, %v25, 0
    %v85 = vsel %vm71, %v26, 0
    %v88 = vsel %vm71, %v27, 0
    %v91 = vsel %vm71, %v28, 0
    %v94 = vsel %vm71, %v21, 0
    %96 = vmatprep.subr.mxu0 0.0
    %97 = vmatpush1.xpose.msra.mxu0 0.0
    %98 = vmatprep.subr.mxu0 0.0
    %99 = vmatpush1.xpose.msra.mxu0 0.0
    %100 = vmatprep.subr.mxu0 0.0
    %101 = vmatpush1.xpose.msra.mxu0 0.0
    %102 = vmatprep.subr.mxu0 0.0
    %103 = vmatpush1.xpose.msra.mxu0 0.0
    %104 = vmatprep.subr.mxu0 0.0
    %105 = vmatpush1.xpose.msra.mxu0 0.0
    %106 = vmatprep.subr.mxu0 0.0
    %107 = vmatpush1.xpose.msra.mxu0 0.0
    %108 = vmatprep.subr.mxu0 0.0
    %109 = vmatpush1.xpose.msra.mxu0 0.0
    %110 = vmatprep.subr.mxu0 0.0
    %111 = vmatpush1.xpose.msra.mxu0 0.0
    %112 = vmatprep.subr.mxu0 0.0
    %113 = vmatpush1.xpose.msra.mxu0 0.0
    %114 = vmatprep.subr.mxu0 0.0
    %115 = vmatpush1.xpose.msra.mxu0 0.0
    %116 = vmatprep.subr.mxu0 0.0
    %117 = vmatpush1.xpose.msra.mxu0 0.0
    %118 = vmatprep.subr.mxu0 0.0
    %119 = vmatpush1.xpose.msra.mxu0 0.0
    %120 = vmatprep.subr.mxu0 0.0
    %121 = vmatpush1.xpose.msra.mxu0 0.0
    %122 = vmatprep.subr.mxu0 0.0
    %123 = vmatpush1.xpose.msra.mxu0 0.0
    %124 = vmatprep.subr.mxu0 0.0
    %125 = vmatpush1.xpose.msra.mxu0 0.0
    %126 = vmatprep.subr.mxu0 0.0
    %127 = vmatpush1.xpose.msra.mxu0 %v94
    %128 = vmatprep.subr.mxu0 0.0
    %129 = vmatpush2.xpose.msra.mxu0 0.0
    %130 = vmatprep.subr.mxu0 0.0
    %131 = vmatpush2.xpose.msra.mxu0 0.0
    %132 = vmatprep.subr.mxu0 0.0
    %133 = vmatpush2.xpose.msra.mxu0 0.0
    %134 = vmatprep.subr.mxu0 0.0
    %135 = vmatpush2.xpose.msra.mxu0 0.0
    %136 = vmatprep.subr.mxu0 0.0
    %137 = vmatpush2.xpose.msra.mxu0 0.0
    %138 = vmatprep.subr.mxu0 0.0
    %139 = vmatpush2.xpose.msra.mxu0 0.0
    %140 = vmatprep.subr.mxu0 0.0
    %141 = vmatpush2.xpose.msra.mxu0 0.0
    %142 = vmatprep.subr.mxu0 0.0
    %143 = vmatpush2.xpose.msra.mxu0 0.0
    %144 = vmatprep.subr.mxu0 0.0
    %145 = vmatpush2.xpose.msra.mxu0 0.0
    %146 = vmatprep.subr.mxu0 0.0
    %147 = vmatpush2.xpose.msra.mxu0 0.0
    %148 = vmatprep.subr.mxu0 0.0
    %149 = vmatpush2.xpose.msra.mxu0 0.0
    %150 = vmatprep.subr.mxu0 0.0
    %151 = vmatpush2.xpose.msra.mxu0 0.0
    %152 = vmatprep.subr.mxu0 0.0
    %153 = vmatpush2.xpose.msra.mxu0 0.0
    %154 = vmatprep.subr.mxu0 0.0
    %155 = vmatpush2.xpose.msra.mxu0 0.0
    %156 = vmatprep.subr.mxu0 0.0
    %157 = vmatpush2.xpose.msra.mxu0 0.0
    %158 = vmatprep.subr.mxu0 0.0
    %159 = vmatpush2.xpose.msra.mxu0 0.0
    %160 = vmatprep.mubr.f32.mxu0 0.0
    %161 = vmatmul.mubr.f32.gmra.mxu0 %v73
    %v162 = vpop.f32.mrf.mxu0
    %v163 = vadd.f32 %v39, %v162
    %v164 = vpop.f32.mrf.mxu0
    %165 = vmatprep.mubr.f32.mxu0 0.0
    %166 = vmatmul.mubr.f32.gmra.mxu0 %v76
    %v167 = vpop.f32.mrf.mxu0
    %v168 = vadd.f32 %v44, %v167
    %v169 = vpop.f32.mrf.mxu0
    %170 = vmatprep.mubr.f32.mxu0 0.0
    %171 = vmatmul.mubr.f32.gmra.mxu0 %v79
    %v172 = vpop.f32.mrf.mxu0
    %v173 = vadd.f32 %v49, %v172
    %v174 = vpop.f32.mrf.mxu0
    %175 = vmatprep.mubr.f32.mxu0 0.0
    %176 = vmatmul.mubr.f32.gmra.mxu0 %v82
    %v177 = vpop.f32.mrf.mxu0
    %v178 = vadd.f32 %v54, %v177
    %v179 = vpop.f32.mrf.mxu0
    %180 = vmatprep.mubr.f32.mxu0 0.0
    %181 = vmatmul.mubr.f32.gmra.mxu0 %v85
    %v182 = vpop.f32.mrf.mxu0
    %v183 = vadd.f32 %v59, %v182
    %v184 = vpop.f32.mrf.mxu0
    %185 = vmatprep.mubr.f32.mxu0 0.0
    %186 = vmatmul.mubr.f32.gmra.mxu0 %v88
    %v187 = vpop.f32.mrf.mxu0
    %v188 = vadd.f32 %v64, %v187
    %v189 = vpop.f32.mrf.mxu0
    %190 = vmatprep.mubr.f32.mxu0 0.0
    %191 = vmatmul.mubr.f32.gmra.mxu0 %v91
    %v192 = vpop.f32.mrf.mxu0
    %v193 = vadd.f32 %v69, %v192
    %v194 = vpop.f32.mrf.mxu0
    %195 = vdwg.mxu0
    %v196 = vmax.f32 %v163, 0.0
    %v197 = vmax.f32 %v168, 0.0
    %v198 = vmax.f32 %v173, 0.0
    %v199 = vmax.f32 %v178, 0.0
    %v200 = vmax.f32 %v183, 0.0
    %v201 = vmax.f32 %v188, 0.0
    %v202 = vmax.f32 %v193, 0.0
    %v203 = vld [vmem:[%s3] sm:$0x7]
    %v204 = vld [vmem:[%s4] sm:$0x7]
    %206 = vset.pattern.permute.xlu0 0
    %207 = vperm.xlu0 %206, %v204
    %v208 = vpop.permute.xlu0 %207
    %vm210 = vcmask 408576
    %v212 = vsel %vm210, %v203, 0
    %vm214 = vcmask 1041408
    %v216 = vsel %vm214, %v202, 0
    %218 = vmatprep.subr.mxu0 0.0
    %219 = vmatpush1.msra.mxu0 0.0
    %220 = vmatprep.subr.mxu0 0.0
    %221 = vmatpush1.msra.mxu0 0.0
    %222 = vmatprep.subr.mxu0 0.0
    %223 = vmatpush1.msra.mxu0 0.0
    %224 = vmatprep.subr.mxu0 0.0
    %225 = vmatpush1.msra.mxu0 0.0
    %226 = vmatprep.subr.mxu0 0.0
    %227 = vmatpush1.msra.mxu0 0.0
    %228 = vmatprep.subr.mxu0 0.0
    %229 = vmatpush1.msra.mxu0 0.0
    %230 = vmatprep.subr.mxu0 0.0
    %231 = vmatpush1.msra.mxu0 0.0
    %232 = vmatprep.subr.mxu0 0.0
    %233 = vmatpush1.msra.mxu0 0.0
    %234 = vmatprep.subr.mxu0 0.0
    %235 = vmatpush1.msra.mxu0 0.0
    %236 = vmatprep.subr.mxu0 0.0
    %237 = vmatpush1.msra.mxu0 %v216
    %238 = vmatprep.subr.mxu0 0.0
    %239 = vmatpush1.msra.mxu0 %v201
    %240 = vmatprep.subr.mxu0 0.0
    %241 = vmatpush1.msra.mxu0 %v200
    %242 = vmatprep.subr.mxu0 0.0
    %243 = vmatpush1.msra.mxu0 %v199
    %244 = vmatprep.subr.mxu0 0.0
    %245 = vmatpush1.msra.mxu0 %v198
    %246 = vmatprep.subr.mxu0 0.0
    %247 = vmatpush1.msra.mxu0 %v197
    %248 = vmatprep.subr.mxu0 0.0
    %249 = vmatpush1.msra.mxu0 %v196
    %250 = vmatprep.subr.mxu0 0.0
    %251 = vmatpush2.msra.mxu0 0.0
    %252 = vmatprep.subr.mxu0 0.0
    %253 = vmatpush2.msra.mxu0 0.0
    %254 = vmatprep.subr.mxu0 0.0
    %255 = vmatpush2.msra.mxu0 0.0
    %256 = vmatprep.subr.mxu0 0.0
    %257 = vmatpush2.msra.mxu0 0.0
    %258 = vmatprep.subr.mxu0 0.0
    %259 = vmatpush2.msra.mxu0 0.0
    %260 = vmatprep.subr.mxu0 0.0
    %261 = vmatpush2.msra.mxu0 0.0
    %262 = vmatprep.subr.mxu0 0.0
    %263 = vmatpush2.msra.mxu0 0.0
    %264 = vmatprep.subr.mxu0 0.0
    %265 = vmatpush2.msra.mxu0 0.0
    %266 = vmatprep.subr.mxu0 0.0
    %267 = vmatpush2.msra.mxu0 0.0
    %268 = vmatprep.subr.mxu0 0.0
    %269 = vmatpush2.msra.mxu0 0.0
    %270 = vmatprep.subr.mxu0 0.0
    %271 = vmatpush2.msra.mxu0 0.0
    %272 = vmatprep.subr.mxu0 0.0
    %273 = vmatpush2.msra.mxu0 0.0
    %274 = vmatprep.subr.mxu0 0.0
    %275 = vmatpush2.msra.mxu0 0.0
    %276 = vmatprep.subr.mxu0 0.0
    %277 = vmatpush2.msra.mxu0 0.0
    %278 = vmatprep.subr.mxu0 0.0
    %279 = vmatpush2.msra.mxu0 0.0
    %280 = vmatprep.subr.mxu0 0.0
    %281 = vmatpush2.msra.mxu0 0.0
    %282 = vmatprep.mubr.f32.mxu0 0.0
    %283 = vmatmul.mubr.f32.gmra.mxu0 %v212
    %v284 = vpop.f32.mrf.mxu0
    %v285 = vadd.f32 %v208, %v284
    %v286 = vpop.f32.mrf.mxu0
    %287 = vdwg.mxu0
    %vm288 = vcmask 59392
    %289 = vst.msk [vmem:[#allocation2] sm:$0x7] %vm288, %v285
    // Predicated region
    $region22: #{net_forward.1} parent=1 // pred_check
      _
    $region23: #{net_forward.1} parent=1 // pred_check_branch
      %291 = sbr.rel (0) target = $region25
    $region24: #{net_forward.1} parent=1 // pred_region
      %s293 = ssub.s32 64, 64
      %294 = vsyncadd [#allocation3], %s293
      %s296 = sshll.u32 [#allocation2], 4
      %s297 = int_to_ptr.vmem [resolvable:$true] %s296
      %299 = dma.vmem_to_hbm [thread:$0]  %s297, 64, %s5, [#allocation3]
    $region25: #{net_forward.1} parent=1 // pred_fallthru
      _
    // Predicated region
    $region26: #{net_forward.1} parent=1 // pred_check
      _
    $region27: #{net_forward.1} parent=1 // pred_check_branch
      %301 = sbr.rel (0) target = $region29
    $region28: #{net_forward.1} parent=1 // pred_region
      %302 = dma.done [#allocation3], 64
    $region29: #{net_forward.1} parent=1 // pred_fallthru
      _
    %303 = vsyncpa [#allocation3], 1

</llo_original>
